<compile_context>
chip_gen: v5e
topology: v5e:2x2
jax: 0.10.0
libtpu: 0.0.40
codegen_flags: <defaults>
</compile_context>

<pallas_src>
import functools

import jax
import jax.numpy as jnp
from jax.experimental import pallas as pl
from jax.experimental.pallas import tpu as pltpu


def _vmem_budget():
    """(block-sizing budget, physical VMEM cap) in bytes, generation-aware."""
    try:
        cap = int(pltpu.get_tpu_info().vmem_capacity_bytes)
    except Exception:
        cap = 64 * 1024 * 1024   # v7x per-TensorCore VMEM; conservative elsewhere
    return (cap * 3) // 5, cap


def _vmem_estimate(nb, L, S, E, H, isz):
    """Rough per-grid-step VMEM working set (bytes) for block_batch = nb."""
    db = 2                                                # pipeline double-buffering
    act_in = db * (L + 2 * S) * nb * E * isz              # q/k/v input blocks
    act_out = db * (nb * L * E * isz + nb * L * S * 4)    # out + attw blocks
    weights = db * (4 * E * E * isz + 4 * E * 4)          # wq/wk/wv/wo + f32 biases
    proj = (L + 2 * S) * nb * E * (4 + 2 * isz)           # f32 proj + cast + head-major copy
    scores = 2 * nb * H * L * S * 4                       # scores + softmax p (f32)
    ctx = nb * L * E * (4 + isz)                          # ctx f32 + repacked rows
    attw = nb * L * S * 4
    return act_in + act_out + weights + proj + scores + ctx + attw


def _pick_block_batch(n, L, S, E, H, isz, budget):
    """Largest divisor of N whose per-step working set fits the VMEM budget.
    No artificial row cap / step-count rule: on v5e/v6e the grid is a serial
    loop, so bigger blocks amortize the ~0.35us/step overhead and feed the MXU
    wider row tiles.  TODO(synk): prefer >=2 grid steps on v7x (2 TCs)."""
    divisors = [d for d in range(1, n + 1) if n % d == 0]
    fitting = [d for d in divisors
               if _vmem_estimate(d, L, S, E, H, isz) <= budget]
    return max(fitting) if fitting else 1


def _mha_kernel(q_ref, k_ref, v_ref, wq_ref, wk_ref, wv_ref,
                bq_ref, bk_ref, bv_ref, wo_ref, bo_ref,
                out_ref, attw_ref, *,
                num_heads, head_dim, embed_dim, tgt_len, src_len, block_batch):
    """One block of `block_batch` batch elements per grid step."""
    H, Dh, E = num_heads, head_dim, embed_dim
    L, S, Nb = tgt_len, src_len, block_batch

    mxu_dtype = q_ref.dtype   # bf16 inputs -> bf16 MXU operands; f32 stays f32

    # Batch-major blocks: fold (Nb, L/S) into plain row blocks (no transpose).
    xq = q_ref[...].reshape(Nb * L, E)
    xk = k_ref[...].reshape(Nb * S, E)
    xv = v_ref[...].reshape(Nb * S, E)

    # y = x @ W^T + b with W pre-transposed on the host and the 1/sqrt(Dh)
    # query scaling folded into wq/bq.  Accumulate in f32, then drop straight
    # to the MXU dtype to halve the footprint of everything downstream.
    q = (jnp.dot(xq, wq_ref[...], preferred_element_type=jnp.float32)
         + bq_ref[...]).astype(mxu_dtype)                         # (Nb*L, E)
    k = (jnp.dot(xk, wk_ref[...], preferred_element_type=jnp.float32)
         + bk_ref[...]).astype(mxu_dtype)                         # (Nb*S, E)
    v = (jnp.dot(xv, wv_ref[...], preferred_element_type=jnp.float32)
         + bv_ref[...]).astype(mxu_dtype)                         # (Nb*S, E)

    # Head split: H static lane-slices + one stack per tensor.  The batch dim
    # is folded into the leading einsum batch axis with pure reshapes, so
    # there are no per-(batch, head) loops and no in-kernel transposes.
    # Batch index of the flattened axis is h*Nb + n (head-major).
    # TODO(synk): collapse to a single reshape + dot_general with (b, h) batch
    # dims once Mosaic reliably lowers non-leading batch dims / rank-4
    # minor-preserving transposes.
    qh = jnp.stack([q[:, h * Dh:(h + 1) * Dh].reshape(Nb, L, Dh)
                    for h in range(H)], axis=0).reshape(H * Nb, L, Dh)
    kh = jnp.stack([k[:, h * Dh:(h + 1) * Dh].reshape(Nb, S, Dh)
                    for h in range(H)], axis=0).reshape(H * Nb, S, Dh)
    vh = jnp.stack([v[:, h * Dh:(h + 1) * Dh].reshape(Nb, S, Dh)
                    for h in range(H)], axis=0).reshape(H * Nb, S, Dh)

    # One batched MXU contraction for every (head, batch) pair.
    scores = jnp.einsum('bld,bsd->bls', qh, kh,
                        preferred_element_type=jnp.float32)       # (H*Nb, L, S)

    # Numerically stable softmax, f32 throughout (v5e-safe, 1e-4 weights).
    m = jnp.max(scores, axis=-1, keepdims=True)
    p = jnp.exp(scores - m)
    denom = jnp.sum(p, axis=-1, keepdims=True)
    p = p * pl.reciprocal(denom, approx=False)
    # TODO(synk): bf16 exp on v6e/v7x (EUP-bound regime) + approx reciprocal
    # once bf16-grade attention weights are acceptable downstream.
    # TODO(synk): dropout_p > 0 / key_padding_mask / attn_mask not implemented.

    ctx = jnp.einsum('bls,bsd->bld', p.astype(mxu_dtype), vh,
                     preferred_element_type=jnp.float32)          # (H*Nb, L, Dh)

    # Re-pack heads: H contiguous leading-dim slices + one lane concatenate,
    # then a single output-projection matmul and one full-block store.
    ctx_rows = jnp.concatenate(
        [ctx[h * Nb:(h + 1) * Nb].reshape(Nb * L, Dh) for h in range(H)],
        axis=-1).astype(mxu_dtype)                                 # (Nb*L, E)
    out = (jnp.dot(ctx_rows, wo_ref[...], preferred_element_type=jnp.float32)
           + bo_ref[...])                                          # (Nb*L, E)
    out_ref[...] = out.reshape(Nb, L, E).astype(out_ref.dtype)

    # Head-averaged attention weights: one VPU reduction + one store.
    attw = p.reshape(H, Nb, L, S).sum(axis=0) * (1.0 / H)          # (Nb, L, S)
    attw_ref[...] = attw.astype(attw_ref.dtype)


def multihead_attention(query, key, value, in_proj_weight, in_proj_bias,
                        out_proj_weight, out_proj_bias, num_heads,
                        block_batch=None):
    """query: (L, N, E), key/value: (S, N, E).
       Returns attn_output (L, N, E), attn_output_weights (N, L, S)."""
    L, N, E = query.shape
    S = key.shape[0]
    assert E % num_heads == 0
    Dh = E // num_heads
    dt = query.dtype
    isz = jnp.dtype(dt).itemsize

    budget, cap = _vmem_budget()
    if block_batch is None:
        block_batch = _pick_block_batch(N, L, S, E, num_heads, isz, budget)
    assert N % block_batch == 0
    grid_n = N // block_batch
    est = _vmem_estimate(block_batch, L, S, E, num_heads, isz)
    vmem_limit = int(min(cap, max(32 * 1024 * 1024, 2 * est)))

    # Batch-major activations (host-side transpose) so the kernel needs no
    # in-kernel row reordering.
    # TODO(synk): block the native (L, N, E) layout directly (saves one HBM
    # round trip over q/k/v and the output) once Mosaic supports the required
    # in-kernel (l, h) <-> (h, l) transpose.
    q_b = jnp.transpose(query, (1, 0, 2))   # (N, L, E)
    k_b = jnp.transpose(key, (1, 0, 2))     # (N, S, E)
    v_b = jnp.transpose(value, (1, 0, 2))   # (N, S, E)

    # One-time host-side weight prep: transpose (y = x @ W^T), split, fold the
    # 1/sqrt(Dh) scaling into wq/bq, and pin a single MXU dtype.
    scaling = float(Dh) ** -0.5
    wq_t = (in_proj_weight[0:E].T * scaling).astype(dt)           # (E, E)
    wk_t = in_proj_weight[E:2 * E].T.astype(dt)
    wv_t = in_proj_weight[2 * E:3 * E].T.astype(dt)
    bq = (in_proj_bias[0:E] * scaling).reshape(1, E).astype(jnp.float32)
    bk = in_proj_bias[E:2 * E].reshape(1, E).astype(jnp.float32)
    bv = in_proj_bias[2 * E:3 * E].reshape(1, E).astype(jnp.float32)
    wo_t = out_proj_weight.T.astype(dt)                           # (E, E)
    bo = out_proj_bias.reshape(1, E).astype(jnp.float32)

    kernel = functools.partial(
        _mha_kernel, num_heads=num_heads, head_dim=Dh, embed_dim=E,
        tgt_len=L, src_len=S, block_batch=block_batch)

    out_b, attw = pl.pallas_call(
        kernel,
        out_shape=(
            jax.ShapeDtypeStruct((N, L, E), dt),
            jax.ShapeDtypeStruct((N, L, S), jnp.float32),
        ),
        grid_spec=pltpu.PrefetchScalarGridSpec(
            num_scalar_prefetch=0,
            grid=(grid_n,),
            in_specs=[
                pl.BlockSpec((block_batch, L, E), lambda b: (b, 0, 0)),
                pl.BlockSpec((block_batch, S, E), lambda b: (b, 0, 0)),
                pl.BlockSpec((block_batch, S, E), lambda b: (b, 0, 0)),
                pl.BlockSpec((E, E), lambda b: (0, 0)),   # wq_t (scaled)
                pl.BlockSpec((E, E), lambda b: (0, 0)),   # wk_t
                pl.BlockSpec((E, E), lambda b: (0, 0)),   # wv_t
                pl.BlockSpec((1, E), lambda b: (0, 0)),   # bq (scaled)
                pl.BlockSpec((1, E), lambda b: (0, 0)),   # bk
                pl.BlockSpec((1, E), lambda b: (0, 0)),   # bv
                pl.BlockSpec((E, E), lambda b: (0, 0)),   # wo_t
                pl.BlockSpec((1, E), lambda b: (0, 0)),   # bo
            ],
            out_specs=[
                pl.BlockSpec((block_batch, L, E), lambda b: (b, 0, 0)),
                pl.BlockSpec((block_batch, L, S), lambda b: (b, 0, 0)),
            ],
        ),
        compiler_params=pltpu.CompilerParams(
            dimension_semantics=("parallel",),
            vmem_limit_bytes=vmem_limit),
    )(q_b, k_b, v_b, wq_t, wk_t, wv_t, bq, bk, bv, wo_t, bo)

    attn_out = jnp.transpose(out_b, (1, 0, 2))   # (L, N, E)
    return attn_out, attw


def _reference_mha(query, key, value, in_w, in_b, out_w, out_b, num_heads):
    """Pure-JAX reference mirroring multi_head_attention_forward (no masks,
    dropout=0, need_weights=True)."""
    L, N, E = query.shape
    S = key.shape[0]
    Dh = E // num_heads
    scaling = float(Dh) ** -0.5
    q = query @ in_w[0:E].T + in_b[0:E]
    k = key @ in_w[E:2 * E].T + in_b[E:2 * E]
    v = value @ in_w[2 * E:3 * E].T + in_b[2 * E:3 * E]
    q = q * scaling
    q = q.reshape(L, N * num_heads, Dh).transpose(1, 0, 2)
    k = k.reshape(S, N * num_heads, Dh).transpose(1, 0, 2)
    v = v.reshape(S, N * num_heads, Dh).transpose(1, 0, 2)
    w = jnp.einsum('bld,bsd->bls', q, k)
    w = jax.nn.softmax(w, axis=-1)
    o = jnp.einsum('bls,bsd->bld', w, v)
    o = o.transpose(1, 0, 2).reshape(L, N, E)
    o = o @ out_w.T + out_b
    w_avg = w.reshape(N, num_heads, L, S).sum(axis=1) / num_heads
    return o, w_avg


def _xavier_uniform(key, shape):
    fan_out, fan_in = shape
    bound = (6.0 / (fan_in + fan_out)) ** 0.5
    return jax.random.uniform(key, shape, jnp.float32, -bound, bound)


if __name__ == "__main__":
    L, S, N, E, H = 8, 8, 2, 32, 4   # tgt_len, src_len, batch, embed_dim, heads

    root = jax.random.PRNGKey(0)
    k_inw, k_outw, k_q, k_k, k_v = jax.random.split(root, 5)

    # Deterministic parameter init (shapes from MultiheadAttention.__init__).
    in_proj_weight = _xavier_uniform(k_inw, (3 * E, E))
    in_proj_bias = jnp.zeros((3 * E,), jnp.float32)
    out_proj_weight = _xavier_uniform(k_outw, (E, E))
    out_proj_bias = jnp.zeros((E,), jnp.float32)

    query = jax.random.normal(k_q, (L, N, E), jnp.float32)
    key = jax.random.normal(k_k, (S, N, E), jnp.float32)
    value = jax.random.normal(k_v, (S, N, E), jnp.float32)

    attn_out, attn_weights = multihead_attention(
        query, key, value, in_proj_weight, in_proj_bias,
        out_proj_weight, out_proj_bias, H)
    jax.block_until_ready((attn_out, attn_weights))

    ref_out, ref_weights = _reference_mha(
        query, key, value, in_proj_weight, in_proj_bias,
        out_proj_weight, out_proj_bias, H)

    assert attn_out.shape == (L, N, E)
    assert attn_weights.shape == (N, L, S)
    assert jnp.allclose(attn_out, ref_out, atol=1e-4, rtol=1e-4)
    assert jnp.allclose(attn_weights, ref_weights, atol=1e-4, rtol=1e-4)

    print("KERNEL_OK")
</pallas_src>

<mosaic_0001>
module attributes {stable_mosaic.version = 11 : i64} {
  func.func @_mha_kernel(%arg0: i32, %arg1: memref<2x8x32xf32, #tpu.memory_space<vmem>>, %arg2: memref<2x8x32xf32, #tpu.memory_space<vmem>>, %arg3: memref<2x8x32xf32, #tpu.memory_space<vmem>>, %arg4: memref<32x32xf32, #tpu.memory_space<vmem>>, %arg5: memref<32x32xf32, #tpu.memory_space<vmem>>, %arg6: memref<32x32xf32, #tpu.memory_space<vmem>>, %arg7: memref<1x32xf32, #tpu.memory_space<vmem>>, %arg8: memref<1x32xf32, #tpu.memory_space<vmem>>, %arg9: memref<1x32xf32, #tpu.memory_space<vmem>>, %arg10: memref<32x32xf32, #tpu.memory_space<vmem>>, %arg11: memref<1x32xf32, #tpu.memory_space<vmem>>, %arg12: memref<2x8x32xf32, #tpu.memory_space<vmem>>, %arg13: memref<2x8x8xf32, #tpu.memory_space<vmem>>) attributes {dimension_semantics = [#tpu.dimension_semantics<parallel>], iteration_bounds = array<i64: 1>, scalar_prefetch = 0 : i64, scratch_operands = 0 : i64, tpu.core_type = #tpu.core_type<tc>, window_params = [{transform_indices = @transform_0, window_bounds = array<i64: 2, 8, 32>}, {transform_indices = @transform_1, window_bounds = array<i64: 2, 8, 32>}, {transform_indices = @transform_2, window_bounds = array<i64: 2, 8, 32>}, {pipeline_mode = #tpu.pipeline_mode<synchronous>, transform_indices = @transform_3, window_bounds = array<i64: 32, 32>}, {pipeline_mode = #tpu.pipeline_mode<synchronous>, transform_indices = @transform_4, window_bounds = array<i64: 32, 32>}, {pipeline_mode = #tpu.pipeline_mode<synchronous>, transform_indices = @transform_5, window_bounds = array<i64: 32, 32>}, {pipeline_mode = #tpu.pipeline_mode<synchronous>, transform_indices = @transform_6, window_bounds = array<i64: 1, 32>}, {pipeline_mode = #tpu.pipeline_mode<synchronous>, transform_indices = @transform_7, window_bounds = array<i64: 1, 32>}, {pipeline_mode = #tpu.pipeline_mode<synchronous>, transform_indices = @transform_8, window_bounds = array<i64: 1, 32>}, {pipeline_mode = #tpu.pipeline_mode<synchronous>, transform_indices = @transform_9, window_bounds = array<i64: 32, 32>}, {pipeline_mode = #tpu.pipeline_mode<synchronous>, transform_indices = @transform_10, window_bounds = array<i64: 1, 32>}, {transform_indices = @transform_11, window_bounds = array<i64: 2, 8, 32>}, {transform_indices = @transform_12, window_bounds = array<i64: 2, 8, 8>}]} {
    %c0 = arith.constant 0 : index
    %c0_0 = arith.constant 0 : index
    %c0_1 = arith.constant 0 : index
    %0 = vector.load %arg1[%c0, %c0_0, %c0_1] : memref<2x8x32xf32, #tpu.memory_space<vmem>>, vector<2x8x32xf32>
    %1 = vector.shape_cast %0 : vector<2x8x32xf32> to vector<16x32xf32>
    %c0_2 = arith.constant 0 : index
    %c0_3 = arith.constant 0 : index
    %c0_4 = arith.constant 0 : index
    %2 = vector.load %arg2[%c0_2, %c0_3, %c0_4] : memref<2x8x32xf32, #tpu.memory_space<vmem>>, vector<2x8x32xf32>
    %3 = vector.shape_cast %2 : vector<2x8x32xf32> to vector<16x32xf32>
    %c0_5 = arith.constant 0 : index
    %c0_6 = arith.constant 0 : index
    %c0_7 = arith.constant 0 : index
    %4 = vector.load %arg3[%c0_5, %c0_6, %c0_7] : memref<2x8x32xf32, #tpu.memory_space<vmem>>, vector<2x8x32xf32>
    %5 = vector.shape_cast %4 : vector<2x8x32xf32> to vector<16x32xf32>
    %c0_8 = arith.constant 0 : index
    %c0_9 = arith.constant 0 : index
    %6 = vector.load %arg4[%c0_8, %c0_9] : memref<32x32xf32, #tpu.memory_space<vmem>>, vector<32x32xf32>
    %cst = arith.constant dense<0.000000e+00> : vector<16x32xf32>
    %7 = tpu.matmul %1, %6, %cst {dimension_numbers = #tpu.dot_dimension_numbers<[1], [0], [0], [1], [0, 0, 1, 1], [], []>} : vector<16x32xf32>, vector<32x32xf32>, vector<16x32xf32> -> vector<16x32xf32>
    %c0_10 = arith.constant 0 : index
    %c0_11 = arith.constant 0 : index
    %8 = vector.load %arg7[%c0_10, %c0_11] : memref<1x32xf32, #tpu.memory_space<vmem>>, vector<1x32xf32>
    %9 = vector.broadcast %8 : vector<1x32xf32> to vector<16x32xf32>
    %10 = arith.addf %7, %9 : vector<16x32xf32>
    %c0_12 = arith.constant 0 : index
    %c0_13 = arith.constant 0 : index
    %11 = vector.load %arg5[%c0_12, %c0_13] : memref<32x32xf32, #tpu.memory_space<vmem>>, vector<32x32xf32>
    %cst_14 = arith.constant dense<0.000000e+00> : vector<16x32xf32>
    %12 = tpu.matmul %3, %11, %cst_14 {dimension_numbers = #tpu.dot_dimension_numbers<[1], [0], [0], [1], [0, 0, 1, 1], [], []>} : vector<16x32xf32>, vector<32x32xf32>, vector<16x32xf32> -> vector<16x32xf32>
    %c0_15 = arith.constant 0 : index
    %c0_16 = arith.constant 0 : index
    %13 = vector.load %arg8[%c0_15, %c0_16] : memref<1x32xf32, #tpu.memory_space<vmem>>, vector<1x32xf32>
    %14 = vector.broadcast %13 : vector<1x32xf32> to vector<16x32xf32>
    %15 = arith.addf %12, %14 : vector<16x32xf32>
    %c0_17 = arith.constant 0 : index
    %c0_18 = arith.constant 0 : index
    %16 = vector.load %arg6[%c0_17, %c0_18] : memref<32x32xf32, #tpu.memory_space<vmem>>, vector<32x32xf32>
    %cst_19 = arith.constant dense<0.000000e+00> : vector<16x32xf32>
    %17 = tpu.matmul %5, %16, %cst_19 {dimension_numbers = #tpu.dot_dimension_numbers<[1], [0], [0], [1], [0, 0, 1, 1], [], []>} : vector<16x32xf32>, vector<32x32xf32>, vector<16x32xf32> -> vector<16x32xf32>
    %c0_20 = arith.constant 0 : index
    %c0_21 = arith.constant 0 : index
    %18 = vector.load %arg9[%c0_20, %c0_21] : memref<1x32xf32, #tpu.memory_space<vmem>>, vector<1x32xf32>
    %19 = vector.broadcast %18 : vector<1x32xf32> to vector<16x32xf32>
    %20 = arith.addf %17, %19 : vector<16x32xf32>
    %21 = vector.extract_strided_slice %10 {offsets = [0, 0], sizes = [16, 8], strides = [1, 1]} : vector<16x32xf32> to vector<16x8xf32>
    %22 = vector.shape_cast %21 : vector<16x8xf32> to vector<2x8x8xf32>
    %23 = vector.extract_strided_slice %10 {offsets = [0, 8], sizes = [16, 8], strides = [1, 1]} : vector<16x32xf32> to vector<16x8xf32>
    %24 = vector.shape_cast %23 : vector<16x8xf32> to vector<2x8x8xf32>
    %25 = vector.extract_strided_slice %10 {offsets = [0, 16], sizes = [16, 8], strides = [1, 1]} : vector<16x32xf32> to vector<16x8xf32>
    %26 = vector.shape_cast %25 : vector<16x8xf32> to vector<2x8x8xf32>
    %27 = vector.extract_strided_slice %10 {offsets = [0, 24], sizes = [16, 8], strides = [1, 1]} : vector<16x32xf32> to vector<16x8xf32>
    %28 = vector.shape_cast %27 : vector<16x8xf32> to vector<2x8x8xf32>
    %29 = vector.shape_cast %22 : vector<2x8x8xf32> to vector<1x2x8x8xf32>
    %30 = vector.shape_cast %24 : vector<2x8x8xf32> to vector<1x2x8x8xf32>
    %31 = vector.shape_cast %26 : vector<2x8x8xf32> to vector<1x2x8x8xf32>
    %32 = vector.shape_cast %28 : vector<2x8x8xf32> to vector<1x2x8x8xf32>
    %33 = tpu.concatenate %29, %30, %31, %32 in 0 : vector<1x2x8x8xf32>, vector<1x2x8x8xf32>, vector<1x2x8x8xf32>, vector<1x2x8x8xf32> -> vector<4x2x8x8xf32>
    %34 = vector.shape_cast %33 : vector<4x2x8x8xf32> to vector<8x8x8xf32>
    %35 = vector.extract_strided_slice %15 {offsets = [0, 0], sizes = [16, 8], strides = [1, 1]} : vector<16x32xf32> to vector<16x8xf32>
    %36 = vector.shape_cast %35 : vector<16x8xf32> to vector<2x8x8xf32>
    %37 = vector.extract_strided_slice %15 {offsets = [0, 8], sizes = [16, 8], strides = [1, 1]} : vector<16x32xf32> to vector<16x8xf32>
    %38 = vector.shape_cast %37 : vector<16x8xf32> to vector<2x8x8xf32>
    %39 = vector.extract_strided_slice %15 {offsets = [0, 16], sizes = [16, 8], strides = [1, 1]} : vector<16x32xf32> to vector<16x8xf32>
    %40 = vector.shape_cast %39 : vector<16x8xf32> to vector<2x8x8xf32>
    %41 = vector.extract_strided_slice %15 {offsets = [0, 24], sizes = [16, 8], strides = [1, 1]} : vector<16x32xf32> to vector<16x8xf32>
    %42 = vector.shape_cast %41 : vector<16x8xf32> to vector<2x8x8xf32>
    %43 = vector.shape_cast %36 : vector<2x8x8xf32> to vector<1x2x8x8xf32>
    %44 = vector.shape_cast %38 : vector<2x8x8xf32> to vector<1x2x8x8xf32>
    %45 = vector.shape_cast %40 : vector<2x8x8xf32> to vector<1x2x8x8xf32>
    %46 = vector.shape_cast %42 : vector<2x8x8xf32> to vector<1x2x8x8xf32>
    %47 = tpu.concatenate %43, %44, %45, %46 in 0 : vector<1x2x8x8xf32>, vector<1x2x8x8xf32>, vector<1x2x8x8xf32>, vector<1x2x8x8xf32> -> vector<4x2x8x8xf32>
    %48 = vector.shape_cast %47 : vector<4x2x8x8xf32> to vector<8x8x8xf32>
    %49 = vector.extract_strided_slice %20 {offsets = [0, 0], sizes = [16, 8], strides = [1, 1]} : vector<16x32xf32> to vector<16x8xf32>
    %50 = vector.shape_cast %49 : vector<16x8xf32> to vector<2x8x8xf32>
    %51 = vector.extract_strided_slice %20 {offsets = [0, 8], sizes = [16, 8], strides = [1, 1]} : vector<16x32xf32> to vector<16x8xf32>
    %52 = vector.shape_cast %51 : vector<16x8xf32> to vector<2x8x8xf32>
    %53 = vector.extract_strided_slice %20 {offsets = [0, 16], sizes = [16, 8], strides = [1, 1]} : vector<16x32xf32> to vector<16x8xf32>
    %54 = vector.shape_cast %53 : vector<16x8xf32> to vector<2x8x8xf32>
    %55 = vector.extract_strided_slice %20 {offsets = [0, 24], sizes = [16, 8], strides = [1, 1]} : vector<16x32xf32> to vector<16x8xf32>
    %56 = vector.shape_cast %55 : vector<16x8xf32> to vector<2x8x8xf32>
    %57 = vector.shape_cast %50 : vector<2x8x8xf32> to vector<1x2x8x8xf32>
    %58 = vector.shape_cast %52 : vector<2x8x8xf32> to vector<1x2x8x8xf32>
    %59 = vector.shape_cast %54 : vector<2x8x8xf32> to vector<1x2x8x8xf32>
    %60 = vector.shape_cast %56 : vector<2x8x8xf32> to vector<1x2x8x8xf32>
    %61 = tpu.concatenate %57, %58, %59, %60 in 0 : vector<1x2x8x8xf32>, vector<1x2x8x8xf32>, vector<1x2x8x8xf32>, vector<1x2x8x8xf32> -> vector<4x2x8x8xf32>
    %62 = vector.shape_cast %61 : vector<4x2x8x8xf32> to vector<8x8x8xf32>
    "tpu.trace_start"() <{level = 10 : i32, message = "bld,bsd->bls"}> : () -> ()
    %cst_22 = arith.constant dense<0.000000e+00> : vector<8x8x8xf32>
    %63 = tpu.matmul %34, %48, %cst_22 {dimension_numbers = #tpu.dot_dimension_numbers<[2], [2], [1], [1], [0, 0, 0, 1, 1, 1], [0], [0]>} : vector<8x8x8xf32>, vector<8x8x8xf32>, vector<8x8x8xf32> -> vector<8x8x8xf32>
    "tpu.trace_stop"() : () -> ()
    %cst_23 = arith.constant dense<0xFF800000> : vector<8x8xf32>
    %64 = vector.multi_reduction <maximumf>, %63, %cst_23 [2] : vector<8x8x8xf32> to vector<8x8xf32>
    %65 = vector.shape_cast %64 : vector<8x8xf32> to vector<8x8x1xf32>
    %66 = vector.broadcast %65 : vector<8x8x1xf32> to vector<8x8x8xf32>
    %67 = arith.subf %63, %66 : vector<8x8x8xf32>
    %68 = math.exp %67 : vector<8x8x8xf32>
    %cst_24 = arith.constant dense<0.000000e+00> : vector<8x8xf32>
    %69 = vector.multi_reduction <add>, %68, %cst_24 [2] : vector<8x8x8xf32> to vector<8x8xf32>
    %70 = vector.shape_cast %69 : vector<8x8xf32> to vector<8x8x1xf32>
    %71 = tpu.reciprocal %70 : vector<8x8x1xf32> -> vector<8x8x1xf32>
    %72 = vector.broadcast %71 : vector<8x8x1xf32> to vector<8x8x8xf32>
    %73 = arith.mulf %68, %72 : vector<8x8x8xf32>
    "tpu.trace_start"() <{level = 10 : i32, message = "bls,bsd->bld"}> : () -> ()
    %cst_25 = arith.constant dense<0.000000e+00> : vector<8x8x8xf32>
    %74 = tpu.matmul %73, %62, %cst_25 {dimension_numbers = #tpu.dot_dimension_numbers<[2], [1], [1], [2], [0, 0, 0, 1, 1, 2], [0], [0]>} : vector<8x8x8xf32>, vector<8x8x8xf32>, vector<8x8x8xf32> -> vector<8x8x8xf32>
    "tpu.trace_stop"() : () -> ()
    %75 = vector.extract_strided_slice %74 {offsets = [0, 0, 0], sizes = [2, 8, 8], strides = [1, 1, 1]} : vector<8x8x8xf32> to vector<2x8x8xf32>
    %76 = vector.shape_cast %75 : vector<2x8x8xf32> to vector<16x8xf32>
    %77 = vector.extract_strided_slice %74 {offsets = [2, 0, 0], sizes = [2, 8, 8], strides = [1, 1, 1]} : vector<8x8x8xf32> to vector<2x8x8xf32>
    %78 = vector.shape_cast %77 : vector<2x8x8xf32> to vector<16x8xf32>
    %79 = vector.extract_strided_slice %74 {offsets = [4, 0, 0], sizes = [2, 8, 8], strides = [1, 1, 1]} : vector<8x8x8xf32> to vector<2x8x8xf32>
    %80 = vector.shape_cast %79 : vector<2x8x8xf32> to vector<16x8xf32>
    %81 = vector.extract_strided_slice %74 {offsets = [6, 0, 0], sizes = [2, 8, 8], strides = [1, 1, 1]} : vector<8x8x8xf32> to vector<2x8x8xf32>
    %82 = vector.shape_cast %81 : vector<2x8x8xf32> to vector<16x8xf32>
    %83 = tpu.concatenate %76, %78, %80, %82 in 1 : vector<16x8xf32>, vector<16x8xf32>, vector<16x8xf32>, vector<16x8xf32> -> vector<16x32xf32>
    %c0_26 = arith.constant 0 : index
    %c0_27 = arith.constant 0 : index
    %84 = vector.load %arg10[%c0_26, %c0_27] : memref<32x32xf32, #tpu.memory_space<vmem>>, vector<32x32xf32>
    %cst_28 = arith.constant dense<0.000000e+00> : vector<16x32xf32>
    %85 = tpu.matmul %83, %84, %cst_28 {dimension_numbers = #tpu.dot_dimension_numbers<[1], [0], [0], [1], [0, 0, 1, 1], [], []>} : vector<16x32xf32>, vector<32x32xf32>, vector<16x32xf32> -> vector<16x32xf32>
    %c0_29 = arith.constant 0 : index
    %c0_30 = arith.constant 0 : index
    %86 = vector.load %arg11[%c0_29, %c0_30] : memref<1x32xf32, #tpu.memory_space<vmem>>, vector<1x32xf32>
    %87 = vector.broadcast %86 : vector<1x32xf32> to vector<16x32xf32>
    %88 = arith.addf %85, %87 : vector<16x32xf32>
    %89 = vector.shape_cast %88 : vector<16x32xf32> to vector<2x8x32xf32>
    %c0_31 = arith.constant 0 : index
    %c0_32 = arith.constant 0 : index
    %c0_33 = arith.constant 0 : index
    %90 = vector.load %arg12[%c0_31, %c0_32, %c0_33] : memref<2x8x32xf32, #tpu.memory_space<vmem>>, vector<2x8x32xf32>
    tpu.vector_store %arg12[%c0_31, %c0_32, %c0_33], %89 {strides = array<i32>} : memref<2x8x32xf32, #tpu.memory_space<vmem>>, vector<2x8x32xf32>,
    %91 = vector.shape_cast %73 : vector<8x8x8xf32> to vector<4x2x8x8xf32>
    %cst_34 = arith.constant dense<0.000000e+00> : vector<2x8x8xf32>
    %92 = vector.multi_reduction <add>, %91, %cst_34 [0] : vector<4x2x8x8xf32> to vector<2x8x8xf32>
    %cst_35 = arith.constant 2.500000e-01 : f32
    %93 = vector.broadcast %cst_35 : f32 to vector<2x8x8xf32>
    %94 = arith.mulf %92, %93 : vector<2x8x8xf32>
    %c0_36 = arith.constant 0 : index
    %c0_37 = arith.constant 0 : index
    %c0_38 = arith.constant 0 : index
    %95 = vector.load %arg13[%c0_36, %c0_37, %c0_38] : memref<2x8x8xf32, #tpu.memory_space<vmem>>, vector<2x8x8xf32>
    tpu.vector_store %arg13[%c0_36, %c0_37, %c0_38], %94 {strides = array<i32>} : memref<2x8x8xf32, #tpu.memory_space<vmem>>, vector<2x8x8xf32>,
    return
  }
  func.func @transform_0(%arg0: i32) -> (i32, i32, i32) {
    %c0_i32 = arith.constant 0 : i32
    %c0_i32_0 = arith.constant 0 : i32
    %c0_i32_1 = arith.constant 0 : i32
    return %arg0, %c0_i32, %c0_i32_0 : i32, i32, i32
  }
  func.func @transform_1(%arg0: i32) -> (i32, i32, i32) {
    %c0_i32 = arith.constant 0 : i32
    %c0_i32_0 = arith.constant 0 : i32
    %c0_i32_1 = arith.constant 0 : i32
    return %arg0, %c0_i32, %c0_i32_0 : i32, i32, i32
  }
  func.func @transform_2(%arg0: i32) -> (i32, i32, i32) {
    %c0_i32 = arith.constant 0 : i32
    %c0_i32_0 = arith.constant 0 : i32
    %c0_i32_1 = arith.constant 0 : i32
    return %arg0, %c0_i32, %c0_i32_0 : i32, i32, i32
  }
  func.func @transform_3(%arg0: i32) -> (i32, i32) {
    %c0_i32 = arith.constant 0 : i32
    %c0_i32_0 = arith.constant 0 : i32
    %c0_i32_1 = arith.constant 0 : i32
    return %c0_i32, %c0_i32_0 : i32, i32
  }
  func.func @transform_4(%arg0: i32) -> (i32, i32) {
    %c0_i32 = arith.constant 0 : i32
    %c0_i32_0 = arith.constant 0 : i32
    %c0_i32_1 = arith.constant 0 : i32
    return %c0_i32, %c0_i32_0 : i32, i32
  }
  func.func @transform_5(%arg0: i32) -> (i32, i32) {
    %c0_i32 = arith.constant 0 : i32
    %c0_i32_0 = arith.constant 0 : i32
    %c0_i32_1 = arith.constant 0 : i32
    return %c0_i32, %c0_i32_0 : i32, i32
  }
  func.func @transform_6(%arg0: i32) -> (i32, i32) {
    %c0_i32 = arith.constant 0 : i32
    %c0_i32_0 = arith.constant 0 : i32
    %c0_i32_1 = arith.constant 0 : i32
    return %c0_i32, %c0_i32_0 : i32, i32
  }
  func.func @transform_7(%arg0: i32) -> (i32, i32) {
    %c0_i32 = arith.constant 0 : i32
    %c0_i32_0 = arith.constant 0 : i32
    %c0_i32_1 = arith.constant 0 : i32
    return %c0_i32, %c0_i32_0 : i32, i32
  }
  func.func @transform_8(%arg0: i32) -> (i32, i32) {
    %c0_i32 = arith.constant 0 : i32
    %c0_i32_0 = arith.constant 0 : i32
    %c0_i32_1 = arith.constant 0 : i32
    return %c0_i32, %c0_i32_0 : i32, i32
  }
  func.func @transform_9(%arg0: i32) -> (i32, i32) {
    %c0_i32 = arith.constant 0 : i32
    %c0_i32_0 = arith.constant 0 : i32
    %c0_i32_1 = arith.constant 0 : i32
    return %c0_i32, %c0_i32_0 : i32, i32
  }
  func.func @transform_10(%arg0: i32) -> (i32, i32) {
    %c0_i32 = arith.constant 0 : i32
    %c0_i32_0 = arith.constant 0 : i32
    %c0_i32_1 = arith.constant 0 : i32
    return %c0_i32, %c0_i32_0 : i32, i32
  }
  func.func @transform_11(%arg0: i32) -> (i32, i32, i32) {
    %c0_i32 = arith.constant 0 : i32
    %c0_i32_0 = arith.constant 0 : i32
    %c0_i32_1 = arith.constant 0 : i32
    return %arg0, %c0_i32, %c0_i32_0 : i32, i32, i32
  }
  func.func @transform_12(%arg0: i32) -> (i32, i32, i32) {
    %c0_i32 = arith.constant 0 : i32
    %c0_i32_0 = arith.constant 0 : i32
    %c0_i32_1 = arith.constant 0 : i32
    return %arg0, %c0_i32, %c0_i32_0 : i32, i32, i32
  }
}

</mosaic_0001>

<llo_original>
// kernel: tpu_custom_call.1
$region0: #{tpu_custom_call.1}
  #allocation0 [shape = 'u32[]', space=smem, size = 0x4, offset = 0x4, fixed_abs, tag = 'smem constant byte address 0x4 - core index']
  #allocation1 [shape = 'u32[72,128]{1,0:T(1,128)}', space=vmem, size = 0x9000, scoped, tag = 'internal scratch']
  %s0 = inlined_call_operand.hbm [shape: f32[2,8,32], index: 0, kind: input, shape index: {}]
  %s1 = inlined_call_operand.hbm [shape: f32[2,8,32], index: 1, kind: input, shape index: {}]
  %s2 = inlined_call_operand.hbm [shape: f32[2,8,32], index: 2, kind: input, shape index: {}]
  %s3 = inlined_call_operand.hbm [shape: f32[32,32], index: 3, kind: input, shape index: {}]
  %s4 = inlined_call_operand.hbm [shape: f32[32,32], index: 4, kind: input, shape index: {}]
  %s5 = inlined_call_operand.hbm [shape: f32[32,32], index: 5, kind: input, shape index: {}]
  %s6 = inlined_call_operand.vmem [shape: f32[1,32], index: 6, kind: input, shape index: {}]
  %s7 = inlined_call_operand.vmem [shape: f32[1,32], index: 7, kind: input, shape index: {}]
  %s8 = inlined_call_operand.vmem [shape: f32[1,32], index: 8, kind: input, shape index: {}]
  %s9 = inlined_call_operand.hbm [shape: f32[32,32], index: 9, kind: input, shape index: {}]
  %s10 = inlined_call_operand.vmem [shape: f32[1,32], index: 10, kind: input, shape index: {}]
  %s11 = inlined_call_operand.hbm [shape: f32[2,8,32], index: 11, kind: output, shape index: {0}]
  %s12 = inlined_call_operand.hbm [shape: f32[2,8,8], index: 12, kind: output, shape index: {1}]
  %13 = xla_tuple %s11, %s12
  %s14 = sld [smem:[#allocation0]]
  $region90: #{tpu_custom_call.1} parent=0
    _
  %s16 = ssub.s32 1, %s14
  %s17 = scalar_select 0, %s16, %s14
  $region1: #{tpu_custom_call.1} parent=0
    #allocation2 [shape = 'u8[8192]{0}', space=vmem, size = 0x2000, scoped, tag = 'input window, operand 0, single buffered']
    #allocation3 [shape = 's32[1]{0}', space=sflag, size = 0x4, scoped, tag = 'scoped memory for tpu_custom_call.1']
    #allocation4 [shape = 's32[1]{0}', space=sflag, size = 0x4, scoped, tag = 'scoped memory for tpu_custom_call.1']
    #allocation5 [shape = 'u8[8192]{0}', space=vmem, size = 0x2000, scoped, tag = 'input window, operand 1, single buffered']
    #allocation6 [shape = 's32[1]{0}', space=sflag, size = 0x4, scoped, tag = 'scoped memory for tpu_custom_call.1']
    #allocation7 [shape = 'u8[8192]{0}', space=vmem, size = 0x2000, scoped, tag = 'input window, operand 2, single buffered']
    #allocation8 [shape = 'u8[16384]{0}', space=vmem, size = 0x4000, scoped, tag = 'input window, operand 3, single buffered']
    #allocation9 [shape = 's32[1]{0}', space=sflag, size = 0x4, scoped, tag = 'scoped memory for tpu_custom_call.1']
    #allocation10 [shape = 'u8[16384]{0}', space=vmem, size = 0x4000, scoped, tag = 'input window, operand 4, single buffered']
    #allocation11 [shape = 'u8[16384]{0}', space=vmem, size = 0x4000, scoped, tag = 'input window, operand 5, single buffered']
    #allocation12 [shape = 's32[1]{0}', space=sflag, size = 0x4, scoped, tag = 'scoped memory for tpu_custom_call.1']
    #allocation13 [shape = 'u8[16384]{0}', space=vmem, size = 0x4000, scoped, tag = 'input window, operand 9, single buffered']
    #allocation14 [shape = 'u8[8192]{0}', space=vmem, size = 0x2000, scoped, tag = 'output window, operand 0, single buffered']
    #allocation15 [shape = 'u8[8192]{0}', space=vmem, size = 0x2000, scoped, tag = 'output window, operand 1, single buffered']
    #allocation16 [shape = 's32[1]{0}', space=sflag, size = 0x4, scoped, tag = 'scoped memory for tpu_custom_call.1']
    %18 = vsyncpa [#allocation3], 0
    %19 = vsyncpa [#allocation6], 0
    %20 = vsyncpa [#allocation9], 0
    %21 = vsyncpa [#allocation12], 0
    %22 = vsyncpa [#allocation4], 0
    %23 = vsyncpa [#allocation16], 0
    // Predicated region
    $region2: #{tpu_custom_call.1} parent=1 // pred_check
      _
    $region3: #{tpu_custom_call.1} parent=1 // pred_check_branch
      %25 = sbr.rel (0) target = $region5
    $region4: #{tpu_custom_call.1} parent=1 // pred_region
      %27 = vsyncadd [#allocation3], 0
      %s28 = sshll.u32 %s0, 4
      %s29 = int_to_ptr.hbm [resolvable:$true] %s28
      %s30 = sshll.u32 [#allocation2], 4
      %s31 = int_to_ptr.vmem [resolvable:$true] %s30
      %36 = dma.hbm_to_vmem [thread:$0]  %s29, 256, %s31, [#allocation3], 128, 128, 8
    $region5: #{tpu_custom_call.1} parent=1 // pred_fallthru
      _
    // Predicated region
    $region6: #{tpu_custom_call.1} parent=1 // pred_check
      _
    $region7: #{tpu_custom_call.1} parent=1 // pred_check_branch
      %38 = sbr.rel (0) target = $region9
    $region8: #{tpu_custom_call.1} parent=1 // pred_region
      %40 = vsyncadd [#allocation6], 0
      %s41 = sshll.u32 %s1, 4
      %s42 = int_to_ptr.hbm [resolvable:$true] %s41
      %s43 = sshll.u32 [#allocation5], 4
      %s44 = int_to_ptr.vmem [resolvable:$true] %s43
      %49 = dma.hbm_to_vmem [thread:$0]  %s42, 256, %s44, [#allocation6], 128, 128, 8
    $region9: #{tpu_custom_call.1} parent=1 // pred_fallthru
      _
    // Predicated region
    $region10: #{tpu_custom_call.1} parent=1 // pred_check
      _
    $region11: #{tpu_custom_call.1} parent=1 // pred_check_branch
      %51 = sbr.rel (0) target = $region13
    $region12: #{tpu_custom_call.1} parent=1 // pred_region
      %53 = vsyncadd [#allocation6], 0
      %s54 = sshll.u32 %s2, 4
      %s55 = int_to_ptr.hbm [resolvable:$true] %s54
      %s56 = sshll.u32 [#allocation7], 4
      %s57 = int_to_ptr.vmem [resolvable:$true] %s56
      %62 = dma.hbm_to_vmem [thread:$0]  %s55, 256, %s57, [#allocation6], 128, 128, 8
    $region13: #{tpu_custom_call.1} parent=1 // pred_fallthru
      _
    // Predicated region
    $region14: #{tpu_custom_call.1} parent=1 // pred_check
      _
    $region15: #{tpu_custom_call.1} parent=1 // pred_check_branch
      %64 = sbr.rel (0) target = $region17
    $region16: #{tpu_custom_call.1} parent=1 // pred_region
      %66 = vsyncadd [#allocation9], 0
      %s67 = sshll.u32 %s3, 4
      %s68 = int_to_ptr.hbm [resolvable:$true] %s67
      %s69 = sshll.u32 [#allocation8], 4
      %s70 = int_to_ptr.vmem [resolvable:$true] %s69
      %75 = dma.hbm_to_vmem [thread:$0]  %s68, 512, %s70, [#allocation9], 128, 128, 8
    $region17: #{tpu_custom_call.1} parent=1 // pred_fallthru
      _
    // Predicated region
    $region18: #{tpu_custom_call.1} parent=1 // pred_check
      _
    $region19: #{tpu_custom_call.1} parent=1 // pred_check_branch
      %77 = sbr.rel (0) target = $region21
    $region20: #{tpu_custom_call.1} parent=1 // pred_region
      %79 = vsyncadd [#allocation9], 0
      %s80 = sshll.u32 %s4, 4
      %s81 = int_to_ptr.hbm [resolvable:$true] %s80
      %s82 = sshll.u32 [#allocation10], 4
      %s83 = int_to_ptr.vmem [resolvable:$true] %s82
      %88 = dma.hbm_to_vmem [thread:$0]  %s81, 512, %s83, [#allocation9], 128, 128, 8
    $region21: #{tpu_custom_call.1} parent=1 // pred_fallthru
      _
    // Predicated region
    $region22: #{tpu_custom_call.1} parent=1 // pred_check
      _
    $region23: #{tpu_custom_call.1} parent=1 // pred_check_branch
      %90 = sbr.rel (0) target = $region25
    $region24: #{tpu_custom_call.1} parent=1 // pred_region
      %92 = vsyncadd [#allocation12], 0
      %s93 = sshll.u32 %s5, 4
      %s94 = int_to_ptr.hbm [resolvable:$true] %s93
      %s95 = sshll.u32 [#allocation11], 4
      %s96 = int_to_ptr.vmem [resolvable:$true] %s95
      %101 = dma.hbm_to_vmem [thread:$0]  %s94, 512, %s96, [#allocation12], 128, 128, 8
    $region25: #{tpu_custom_call.1} parent=1 // pred_fallthru
      _
    // Predicated region
    $region26: #{tpu_custom_call.1} parent=1 // pred_check
      _
    $region27: #{tpu_custom_call.1} parent=1 // pred_check_branch
      %103 = sbr.rel (0) target = $region29
    $region28: #{tpu_custom_call.1} parent=1 // pred_region
      _
    $region29: #{tpu_custom_call.1} parent=1 // pred_fallthru
      _
    // Predicated region
    $region30: #{tpu_custom_call.1} parent=1 // pred_check
      _
    $region31: #{tpu_custom_call.1} parent=1 // pred_check_branch
      %105 = sbr.rel (0) target = $region33
    $region32: #{tpu_custom_call.1} parent=1 // pred_region
      _
    $region33: #{tpu_custom_call.1} parent=1 // pred_fallthru
      _
    // Predicated region
    $region34: #{tpu_custom_call.1} parent=1 // pred_check
      _
    $region35: #{tpu_custom_call.1} parent=1 // pred_check_branch
      %107 = sbr.rel (0) target = $region37
    $region36: #{tpu_custom_call.1} parent=1 // pred_region
      _
    $region37: #{tpu_custom_call.1} parent=1 // pred_fallthru
      _
    // Predicated region
    $region38: #{tpu_custom_call.1} parent=1 // pred_check
      _
    $region39: #{tpu_custom_call.1} parent=1 // pred_check_branch
      %109 = sbr.rel (0) target = $region41
    $region40: #{tpu_custom_call.1} parent=1 // pred_region
      %111 = vsyncadd [#allocation12], 0
      %s112 = sshll.u32 %s9, 4
      %s113 = int_to_ptr.hbm [resolvable:$true] %s112
      %s114 = sshll.u32 [#allocation13], 4
      %s115 = int_to_ptr.vmem [resolvable:$true] %s114
      %120 = dma.hbm_to_vmem [thread:$0]  %s113, 512, %s115, [#allocation12], 128, 128, 8
    $region41: #{tpu_custom_call.1} parent=1 // pred_fallthru
      _
    // Predicated region
    $region42: #{tpu_custom_call.1} parent=1 // pred_check
      _
    $region43: #{tpu_custom_call.1} parent=1 // pred_check_branch
      %122 = sbr.rel (0) target = $region45
    $region44: #{tpu_custom_call.1} parent=1 // pred_region
      _
    $region45: #{tpu_custom_call.1} parent=1 // pred_fallthru
      _
    // Predicated region
    $region46: #{tpu_custom_call.1} parent=1 // pred_check
      _
    $region47: #{tpu_custom_call.1} parent=1 // pred_check_branch
      %124 = sbr.rel (0) target = $region49
    $region48: #{tpu_custom_call.1} parent=1 // pred_region
      %126 = dma.done [#allocation3], 256
    $region49: #{tpu_custom_call.1} parent=1 // pred_fallthru
      _
    // Predicated region
    $region50: #{tpu_custom_call.1} parent=1 // pred_check
      _
    $region51: #{tpu_custom_call.1} parent=1 // pred_check_branch
      %128 = sbr.rel (0) target = $region53
    $region52: #{tpu_custom_call.1} parent=1 // pred_region
      %130 = dma.done [#allocation6], 256
    $region53: #{tpu_custom_call.1} parent=1 // pred_fallthru
      _
    // Predicated region
    $region54: #{tpu_custom_call.1} parent=1 // pred_check
      _
    $region55: #{tpu_custom_call.1} parent=1 // pred_check_branch
      %132 = sbr.rel (0) target = $region57
    $region56: #{tpu_custom_call.1} parent=1 // pred_region
      %134 = dma.done [#allocation6], 256
    $region57: #{tpu_custom_call.1} parent=1 // pred_fallthru
      _
    // Predicated region
    $region58: #{tpu_custom_call.1} parent=1 // pred_check
      _
    $region59: #{tpu_custom_call.1} parent=1 // pred_check_branch
      %136 = sbr.rel (0) target = $region61
    $region60: #{tpu_custom_call.1} parent=1 // pred_region
      %138 = dma.done [#allocation9], 512
    $region61: #{tpu_custom_call.1} parent=1 // pred_fallthru
      _
    // Predicated region
    $region62: #{tpu_custom_call.1} parent=1 // pred_check
      _
    $region63: #{tpu_custom_call.1} parent=1 // pred_check_branch
      %140 = sbr.rel (0) target = $region65
    $region64: #{tpu_custom_call.1} parent=1 // pred_region
      %142 = dma.done [#allocation9], 512
    $region65: #{tpu_custom_call.1} parent=1 // pred_fallthru
      _
    // Predicated region
    $region66: #{tpu_custom_call.1} parent=1 // pred_check
      _
    $region67: #{tpu_custom_call.1} parent=1 // pred_check_branch
      %144 = sbr.rel (0) target = $region69
    $region68: #{tpu_custom_call.1} parent=1 // pred_region
      %146 = dma.done [#allocation12], 512
    $region69: #{tpu_custom_call.1} parent=1 // pred_fallthru
      _
    // Predicated region
    $region70: #{tpu_custom_call.1} parent=1 // pred_check
      _
    $region71: #{tpu_custom_call.1} parent=1 // pred_check_branch
      %148 = sbr.rel (0) target = $region73
    $region72: #{tpu_custom_call.1} parent=1 // pred_region
      %150 = dma.done [#allocation12], 512
    $region73: #{tpu_custom_call.1} parent=1 // pred_fallthru
      _
    %v151 = vld [vmem:[#allocation2] sm:$0xff]
    %v152 = vld [vmem:[#allocation2 + $0x8] sm:$0xff]
    %v153 = vld [vmem:[#allocation5] sm:$0xff]
    %v154 = vld [vmem:[#allocation5 + $0x8] sm:$0xff]
    %v155 = vld [vmem:[#allocation7] sm:$0xff]
    %v156 = vld [vmem:[#allocation7 + $0x8] sm:$0xff]
    %v157 = vld [vmem:[#allocation8] sm:$0xff]
    %v158 = vld [vmem:[#allocation8 + $0x8] sm:$0xff]
    %v159 = vld [vmem:[#allocation8 + $0x10] sm:$0xff]
    %v160 = vld [vmem:[#allocation8 + $0x18] sm:$0xff]
    %v161 = vld [vmem:[%s6] sm:$0x1]
    %v163 = vperm.slane %v161, 0
    %vm165 = vcmask 261120
    %v167 = vsel %vm165, %v151, 0
    %v170 = vsel %vm165, %v152, 0
    %172 = vmatpush.msra.mxu0 0.0
    %173 = vmatpush.msra.mxu0 0.0
    %174 = vmatpush.msra.mxu0 0.0
    %175 = vmatpush.msra.mxu0 0.0
    %176 = vmatpush.msra.mxu0 0.0
    %177 = vmatpush.msra.mxu0 0.0
    %178 = vmatpush.msra.mxu0 0.0
    %179 = vmatpush.msra.mxu0 0.0
    %180 = vmatpush.msra.mxu0 0.0
    %181 = vmatpush.msra.mxu0 0.0
    %182 = vmatpush.msra.mxu0 0.0
    %183 = vmatpush.msra.mxu0 0.0
    %184 = vmatpush.msra.mxu0 %v160
    %185 = vmatpush.msra.mxu0 %v159
    %186 = vmatpush.msra.mxu0 %v158
    %187 = vmatpush.msra.mxu0 %v157
    %188 = vmatmul.f32.gmra.mxu0 %v167
    %v189 = vpop.f32.mrf.mxu0
    %v190 = vadd.f32 %v163, %v189
    %191 = vmatmul.f32.gmra.mxu0 %v170
    %v192 = vpop.f32.mrf.mxu0
    %v193 = vadd.f32 %v163, %v192
    %194 = vdwg.mxu0
    %v195 = vld [vmem:[#allocation10] sm:$0xff]
    %v196 = vld [vmem:[#allocation10 + $0x8] sm:$0xff]
    %v197 = vld [vmem:[#allocation10 + $0x10] sm:$0xff]
    %v198 = vld [vmem:[#allocation10 + $0x18] sm:$0xff]
    %v199 = vld [vmem:[%s7] sm:$0x1]
    %v201 = vperm.slane %v199, 0
    %v204 = vsel %vm165, %v153, 0
    %v207 = vsel %vm165, %v154, 0
    %209 = vmatpush.msra.mxu0 0.0
    %210 = vmatpush.msra.mxu0 0.0
    %211 = vmatpush.msra.mxu0 0.0
    %212 = vmatpush.msra.mxu0 0.0
    %213 = vmatpush.msra.mxu0 0.0
    %214 = vmatpush.msra.mxu0 0.0
    %215 = vmatpush.msra.mxu0 0.0
    %216 = vmatpush.msra.mxu0 0.0
    %217 = vmatpush.msra.mxu0 0.0
    %218 = vmatpush.msra.mxu0 0.0
    %219 = vmatpush.msra.mxu0 0.0
    %220 = vmatpush.msra.mxu0 0.0
    %221 = vmatpush.msra.mxu0 %v198
    %222 = vmatpush.msra.mxu0 %v197
    %223 = vmatpush.msra.mxu0 %v196
    %224 = vmatpush.msra.mxu0 %v195
    %225 = vmatmul.f32.gmra.mxu0 %v204
    %v226 = vpop.f32.mrf.mxu0
    %v227 = vadd.f32 %v201, %v226
    %228 = vmatmul.f32.gmra.mxu0 %v207
    %v229 = vpop.f32.mrf.mxu0
    %v230 = vadd.f32 %v201, %v229
    %231 = vdwg.mxu0
    %v232 = vld [vmem:[#allocation11] sm:$0xff]
    %v233 = vld [vmem:[#allocation11 + $0x8] sm:$0xff]
    %v234 = vld [vmem:[#allocation11 + $0x10] sm:$0xff]
    %v235 = vld [vmem:[#allocation11 + $0x18] sm:$0xff]
    %v236 = vld [vmem:[%s8] sm:$0x1]
    %v238 = vperm.slane %v236, 0
    %v241 = vsel %vm165, %v155, 0
    %v244 = vsel %vm165, %v156, 0
    %246 = vmatpush.msra.mxu0 0.0
    %247 = vmatpush.msra.mxu0 0.0
    %248 = vmatpush.msra.mxu0 0.0
    %249 = vmatpush.msra.mxu0 0.0
    %250 = vmatpush.msra.mxu0 0.0
    %251 = vmatpush.msra.mxu0 0.0
    %252 = vmatpush.msra.mxu0 0.0
    %253 = vmatpush.msra.mxu0 0.0
    %254 = vmatpush.msra.mxu0 0.0
    %255 = vmatpush.msra.mxu0 0.0
    %256 = vmatpush.msra.mxu0 0.0
    %257 = vmatpush.msra.mxu0 0.0
    %258 = vmatpush.msra.mxu0 %v235
    %259 = vmatpush.msra.mxu0 %v234
    %260 = vmatpush.msra.mxu0 %v233
    %261 = vmatpush.msra.mxu0 %v232
    %262 = vmatmul.f32.gmra.mxu0 %v241
    %v263 = vpop.f32.mrf.mxu0
    %v264 = vadd.f32 %v238, %v263
    %265 = vmatmul.f32.gmra.mxu0 %v244
    %v266 = vpop.f32.mrf.mxu0
    %v267 = vadd.f32 %v238, %v266
    %268 = vdwg.mxu0
    %271 = vrot.lane.b32.xlu0 %v190, 120
    %v272 = vpop.permute.xlu0 %271
    %273 = vrot.lane.b32.xlu0 %v193, 120
    %v274 = vpop.permute.xlu0 %273
    %275 = vrot.lane.b32.xlu0 %v190, 112
    %v276 = vpop.permute.xlu0 %275
    %277 = vrot.lane.b32.xlu0 %v193, 112
    %v278 = vpop.permute.xlu0 %277
    %279 = vrot.lane.b32.xlu0 %v190, 104
    %v280 = vpop.permute.xlu0 %279
    %281 = vrot.lane.b32.xlu0 %v193, 104
    %v282 = vpop.permute.xlu0 %281
    %285 = vrot.lane.b32.xlu0 %v227, 120
    %v286 = vpop.permute.xlu0 %285
    %287 = vrot.lane.b32.xlu0 %v230, 120
    %v288 = vpop.permute.xlu0 %287
    %289 = vrot.lane.b32.xlu0 %v227, 112
    %v290 = vpop.permute.xlu0 %289
    %291 = vrot.lane.b32.xlu0 %v230, 112
    %v292 = vpop.permute.xlu0 %291
    %293 = vrot.lane.b32.xlu0 %v227, 104
    %v294 = vpop.permute.xlu0 %293
    %295 = vrot.lane.b32.xlu0 %v230, 104
    %v296 = vpop.permute.xlu0 %295
    %299 = vrot.lane.b32.xlu0 %v264, 120
    %v300 = vpop.permute.xlu0 %299
    %301 = vrot.lane.b32.xlu0 %v267, 120
    %v302 = vpop.permute.xlu0 %301
    %305 = vrot.lane.b32.xlu0 %v264, 112
    %v306 = vpop.permute.xlu0 %305
    %307 = vrot.lane.b32.xlu0 %v267, 112
    %v308 = vpop.permute.xlu0 %307
    %311 = vrot.lane.b32.xlu0 %v264, 104
    %v312 = vpop.permute.xlu0 %311
    %313 = vrot.lane.b32.xlu0 %v267, 104
    %v314 = vpop.permute.xlu0 %313
    %vm317 = vcmask 64512
    %v318 = vsel %vm317, %v190, 0
    %v320 = vsel %vm317, %v227, 0
    %322 = vmatpush.xpose.msra.mxu0 0.0
    %323 = vmatpush.xpose.msra.mxu0 0.0
    %324 = vmatpush.xpose.msra.mxu0 0.0
    %325 = vmatpush.xpose.msra.mxu0 0.0
    %326 = vmatpush.xpose.msra.mxu0 0.0
    %327 = vmatpush.xpose.msra.mxu0 0.0
    %328 = vmatpush.xpose.msra.mxu0 0.0
    %329 = vmatpush.xpose.msra.mxu0 0.0
    %330 = vmatpush.xpose.msra.mxu0 0.0
    %331 = vmatpush.xpose.msra.mxu0 0.0
    %332 = vmatpush.xpose.msra.mxu0 0.0
    %333 = vmatpush.xpose.msra.mxu0 0.0
    %334 = vmatpush.xpose.msra.mxu0 0.0
    %335 = vmatpush.xpose.msra.mxu0 0.0
    %336 = vmatpush.xpose.msra.mxu0 0.0
    %337 = vmatpush.xpose.msra.mxu0 %v320
    %338 = vmatmul.f32.gmra.mxu0 %v318
    %v339 = vpop.f32.mrf.mxu0
    %v340 = vadd.f32 0.0, %v339
    %341 = vdwg.mxu0
    %v342 = vsel %vm317, %v193, 0
    %v344 = vsel %vm317, %v230, 0
    %346 = vmatpush.xpose.msra.mxu0 0.0
    %347 = vmatpush.xpose.msra.mxu0 0.0
    %348 = vmatpush.xpose.msra.mxu0 0.0
    %349 = vmatpush.xpose.msra.mxu0 0.0
    %350 = vmatpush.xpose.msra.mxu0 0.0
    %351 = vmatpush.xpose.msra.mxu0 0.0
    %352 = vmatpush.xpose.msra.mxu0 0.0
    %353 = vmatpush.xpose.msra.mxu0 0.0
    %354 = vmatpush.xpose.msra.mxu0 0.0
    %355 = vmatpush.xpose.msra.mxu0 0.0
    %356 = vmatpush.xpose.msra.mxu0 0.0
    %357 = vmatpush.xpose.msra.mxu0 0.0
    %358 = vmatpush.xpose.msra.mxu0 0.0
    %359 = vmatpush.xpose.msra.mxu0 0.0
    %360 = vmatpush.xpose.msra.mxu0 0.0
    %361 = vmatpush.xpose.msra.mxu0 %v344
    %362 = vmatmul.f32.gmra.mxu0 %v342
    %v363 = vpop.f32.mrf.mxu0
    %v364 = vadd.f32 0.0, %v363
    %365 = vdwg.mxu0
    %v366 = vsel %vm317, %v272, 0
    %v368 = vsel %vm317, %v286, 0
    %370 = vmatpush.xpose.msra.mxu0 0.0
    %371 = vmatpush.xpose.msra.mxu0 0.0
    %372 = vmatpush.xpose.msra.mxu0 0.0
    %373 = vmatpush.xpose.msra.mxu0 0.0
    %374 = vmatpush.xpose.msra.mxu0 0.0
    %375 = vmatpush.xpose.msra.mxu0 0.0
    %376 = vmatpush.xpose.msra.mxu0 0.0
    %377 = vmatpush.xpose.msra.mxu0 0.0
    %378 = vmatpush.xpose.msra.mxu0 0.0
    %379 = vmatpush.xpose.msra.mxu0 0.0
    %380 = vmatpush.xpose.msra.mxu0 0.0
    %381 = vmatpush.xpose.msra.mxu0 0.0
    %382 = vmatpush.xpose.msra.mxu0 0.0
    %383 = vmatpush.xpose.msra.mxu0 0.0
    %384 = vmatpush.xpose.msra.mxu0 0.0
    %385 = vmatpush.xpose.msra.mxu0 %v368
    %386 = vmatmul.f32.gmra.mxu0 %v366
    %v387 = vpop.f32.mrf.mxu0
    %v388 = vadd.f32 0.0, %v387
    %389 = vdwg.mxu0
    %v390 = vsel %vm317, %v274, 0
    %v392 = vsel %vm317, %v288, 0
    %394 = vmatpush.xpose.msra.mxu0 0.0
    %395 = vmatpush.xpose.msra.mxu0 0.0
    %396 = vmatpush.xpose.msra.mxu0 0.0
    %397 = vmatpush.xpose.msra.mxu0 0.0
    %398 = vmatpush.xpose.msra.mxu0 0.0
    %399 = vmatpush.xpose.msra.mxu0 0.0
    %400 = vmatpush.xpose.msra.mxu0 0.0
    %401 = vmatpush.xpose.msra.mxu0 0.0
    %402 = vmatpush.xpose.msra.mxu0 0.0
    %403 = vmatpush.xpose.msra.mxu0 0.0
    %404 = vmatpush.xpose.msra.mxu0 0.0
    %405 = vmatpush.xpose.msra.mxu0 0.0
    %406 = vmatpush.xpose.msra.mxu0 0.0
    %407 = vmatpush.xpose.msra.mxu0 0.0
    %408 = vmatpush.xpose.msra.mxu0 0.0
    %409 = vmatpush.xpose.msra.mxu0 %v392
    %410 = vmatmul.f32.gmra.mxu0 %v390
    %v411 = vpop.f32.mrf.mxu0
    %v412 = vadd.f32 0.0, %v411
    %413 = vdwg.mxu0
    %v414 = vsel %vm317, %v276, 0
    %v416 = vsel %vm317, %v290, 0
    %418 = vmatpush.xpose.msra.mxu0 0.0
    %419 = vmatpush.xpose.msra.mxu0 0.0
    %420 = vmatpush.xpose.msra.mxu0 0.0
    %421 = vmatpush.xpose.msra.mxu0 0.0
    %422 = vmatpush.xpose.msra.mxu0 0.0
    %423 = vmatpush.xpose.msra.mxu0 0.0
    %424 = vmatpush.xpose.msra.mxu0 0.0
    %425 = vmatpush.xpose.msra.mxu0 0.0
    %426 = vmatpush.xpose.msra.mxu0 0.0
    %427 = vmatpush.xpose.msra.mxu0 0.0
    %428 = vmatpush.xpose.msra.mxu0 0.0
    %429 = vmatpush.xpose.msra.mxu0 0.0
    %430 = vmatpush.xpose.msra.mxu0 0.0
    %431 = vmatpush.xpose.msra.mxu0 0.0
    %432 = vmatpush.xpose.msra.mxu0 0.0
    %433 = vmatpush.xpose.msra.mxu0 %v416
    %434 = vmatmul.f32.gmra.mxu0 %v414
    %v435 = vpop.f32.mrf.mxu0
    %v436 = vadd.f32 0.0, %v435
    %437 = vdwg.mxu0
    %v438 = vsel %vm317, %v278, 0
    %v440 = vsel %vm317, %v292, 0
    %442 = vmatpush.xpose.msra.mxu0 0.0
    %443 = vmatpush.xpose.msra.mxu0 0.0
    %444 = vmatpush.xpose.msra.mxu0 0.0
    %445 = vmatpush.xpose.msra.mxu0 0.0
    %446 = vmatpush.xpose.msra.mxu0 0.0
    %447 = vmatpush.xpose.msra.mxu0 0.0
    %448 = vmatpush.xpose.msra.mxu0 0.0
    %449 = vmatpush.xpose.msra.mxu0 0.0
    %450 = vmatpush.xpose.msra.mxu0 0.0
    %451 = vmatpush.xpose.msra.mxu0 0.0
    %452 = vmatpush.xpose.msra.mxu0 0.0
    %453 = vmatpush.xpose.msra.mxu0 0.0
    %454 = vmatpush.xpose.msra.mxu0 0.0
    %455 = vmatpush.xpose.msra.mxu0 0.0
    %456 = vmatpush.xpose.msra.mxu0 0.0
    %457 = vmatpush.xpose.msra.mxu0 %v440
    %458 = vmatmul.f32.gmra.mxu0 %v438
    %v459 = vpop.f32.mrf.mxu0
    %v460 = vadd.f32 0.0, %v459
    %461 = vdwg.mxu0
    %v462 = vsel %vm317, %v280, 0
    %v464 = vsel %vm317, %v294, 0
    %466 = vmatpush.xpose.msra.mxu0 0.0
    %467 = vmatpush.xpose.msra.mxu0 0.0
    %468 = vmatpush.xpose.msra.mxu0 0.0
    %469 = vmatpush.xpose.msra.mxu0 0.0
    %470 = vmatpush.xpose.msra.mxu0 0.0
    %471 = vmatpush.xpose.msra.mxu0 0.0
    %472 = vmatpush.xpose.msra.mxu0 0.0
    %473 = vmatpush.xpose.msra.mxu0 0.0
    %474 = vmatpush.xpose.msra.mxu0 0.0
    %475 = vmatpush.xpose.msra.mxu0 0.0
    %476 = vmatpush.xpose.msra.mxu0 0.0
    %477 = vmatpush.xpose.msra.mxu0 0.0
    %478 = vmatpush.xpose.msra.mxu0 0.0
    %479 = vmatpush.xpose.msra.mxu0 0.0
    %480 = vmatpush.xpose.msra.mxu0 0.0
    %481 = vmatpush.xpose.msra.mxu0 %v464
    %482 = vmatmul.f32.gmra.mxu0 %v462
    %v483 = vpop.f32.mrf.mxu0
    %v484 = vadd.f32 0.0, %v483
    %485 = vdwg.mxu0
    %v486 = vsel %vm317, %v282, 0
    %v488 = vsel %vm317, %v296, 0
    %490 = vmatpush.xpose.msra.mxu0 0.0
    %491 = vmatpush.xpose.msra.mxu0 0.0
    %492 = vmatpush.xpose.msra.mxu0 0.0
    %493 = vmatpush.xpose.msra.mxu0 0.0
    %494 = vmatpush.xpose.msra.mxu0 0.0
    %495 = vmatpush.xpose.msra.mxu0 0.0
    %496 = vmatpush.xpose.msra.mxu0 0.0
    %497 = vmatpush.xpose.msra.mxu0 0.0
    %498 = vmatpush.xpose.msra.mxu0 0.0
    %499 = vmatpush.xpose.msra.mxu0 0.0
    %500 = vmatpush.xpose.msra.mxu0 0.0
    %501 = vmatpush.xpose.msra.mxu0 0.0
    %502 = vmatpush.xpose.msra.mxu0 0.0
    %503 = vmatpush.xpose.msra.mxu0 0.0
    %504 = vmatpush.xpose.msra.mxu0 0.0
    %505 = vmatpush.xpose.msra.mxu0 %v488
    %506 = vmatmul.f32.gmra.mxu0 %v486
    %v507 = vpop.f32.mrf.mxu0
    %v508 = vadd.f32 0.0, %v507
    %509 = vdwg.mxu0
    %v510 = vsel %vm317, %v340, -inf
    %511 = vmax.xlane.f32.xlu0 %v510
    %v512 = vpop.xlane.xlu0 %511
    %v513 = vsel %vm317, %v364, -inf
    %514 = vmax.xlane.f32.xlu0 %v513
    %v515 = vpop.xlane.xlu0 %514
    %v516 = vsel %vm317, %v388, -inf
    %517 = vmax.xlane.f32.xlu0 %v516
    %v518 = vpop.xlane.xlu0 %517
    %v519 = vsel %vm317, %v412, -inf
    %520 = vmax.xlane.f32.xlu0 %v519
    %v521 = vpop.xlane.xlu0 %520
    %v522 = vsel %vm317, %v436, -inf
    %523 = vmax.xlane.f32.xlu0 %v522
    %v524 = vpop.xlane.xlu0 %523
    %v525 = vsel %vm317, %v460, -inf
    %526 = vmax.xlane.f32.xlu0 %v525
    %v527 = vpop.xlane.xlu0 %526
    %v528 = vsel %vm317, %v484, -inf
    %529 = vmax.xlane.f32.xlu0 %v528
    %v530 = vpop.xlane.xlu0 %529
    %v531 = vsel %vm317, %v508, -inf
    %532 = vmax.xlane.f32.xlu0 %v531
    %v533 = vpop.xlane.xlu0 %532
    %v534 = vsub.f32 %v340, %v512
    %v535 = vsub.f32 %v364, %v515
    %v536 = vsub.f32 %v388, %v518
    %v537 = vsub.f32 %v412, %v521
    %v538 = vsub.f32 %v436, %v524
    %v539 = vsub.f32 %v460, %v527
    %v540 = vsub.f32 %v484, %v530
    %v541 = vsub.f32 %v508, %v533
    %v542 = vmul.f32 %v534, 1.442695
    %v543 = vpow.pop %v542
    %v544 = vmul.f32 %v535, 1.442695
    %v545 = vpow.pop %v544
    %v546 = vmul.f32 %v536, 1.442695
    %v547 = vpow.pop %v546
    %v548 = vmul.f32 %v537, 1.442695
    %v549 = vpow.pop %v548
    %v550 = vmul.f32 %v538, 1.442695
    %v551 = vpow.pop %v550
    %v552 = vmul.f32 %v539, 1.442695
    %v553 = vpow.pop %v552
    %v554 = vmul.f32 %v540, 1.442695
    %v555 = vpow.pop %v554
    %v556 = vmul.f32 %v541, 1.442695
    %v557 = vpow.pop %v556
    %v558 = vsel %vm317, %v543, 0.0
    %559 = vadd.xlane.f32.xlu0 %v558
    %v560 = vpop.xlane.xlu0 %559
    %v561 = vsel %vm317, %v545, 0.0
    %562 = vadd.xlane.f32.xlu0 %v561
    %v563 = vpop.xlane.xlu0 %562
    %v564 = vsel %vm317, %v547, 0.0
    %565 = vadd.xlane.f32.xlu0 %v564
    %v566 = vpop.xlane.xlu0 %565
    %v567 = vsel %vm317, %v549, 0.0
    %568 = vadd.xlane.f32.xlu0 %v567
    %v569 = vpop.xlane.xlu0 %568
    %v570 = vsel %vm317, %v551, 0.0
    %571 = vadd.xlane.f32.xlu0 %v570
    %v572 = vpop.xlane.xlu0 %571
    %v573 = vsel %vm317, %v553, 0.0
    %574 = vadd.xlane.f32.xlu0 %v573
    %v575 = vpop.xlane.xlu0 %574
    %v576 = vsel %vm317, %v555, 0.0
    %577 = vadd.xlane.f32.xlu0 %v576
    %v578 = vpop.xlane.xlu0 %577
    %v579 = vsel %vm317, %v557, 0.0
    %580 = vadd.xlane.f32.xlu0 %v579
    %v581 = vpop.xlane.xlu0 %580
    %v582 = vrcp.pop %v560
    %v583 = vmul.f32 %v560, %v582
    %v584 = vsub.f32 1.0, %v583
    %v585 = vmul.f32 %v582, %v584
    %v586 = vadd.f32 %v582, %v585
    %vm587 = vweird.f32 %v560
    %vm588 = vweird.f32 %v582
    %vm589 = vmor %vm587, %vm588
    %v590 = vsel %vm589, %v582, %v586
    %v591 = vand.u32 2147483647, %v560
    %vm592 = vcmp.eq.f32.partialorder %v591, 8.507059e+37
    %v593 = vand.u32 %v560, 2147483648
    %v594 = vor.u32 1.1754944e-38, %v593
    %v595 = vsel %vm592, %v594, %v590
    %v596 = vrcp.pop %v563
    %v597 = vmul.f32 %v563, %v596
    %v598 = vsub.f32 1.0, %v597
    %v599 = vmul.f32 %v596, %v598
    %v600 = vadd.f32 %v596, %v599
    %vm601 = vweird.f32 %v563
    %vm602 = vweird.f32 %v596
    %vm603 = vmor %vm601, %vm602
    %v604 = vsel %vm603, %v596, %v600
    %v605 = vand.u32 2147483647, %v563
    %vm606 = vcmp.eq.f32.partialorder %v605, 8.507059e+37
    %v607 = vand.u32 %v563, 2147483648
    %v608 = vor.u32 1.1754944e-38, %v607
    %v609 = vsel %vm606, %v608, %v604
    %v610 = vrcp.pop %v566
    %v611 = vmul.f32 %v566, %v610
    %v612 = vsub.f32 1.0, %v611
    %v613 = vmul.f32 %v610, %v612
    %v614 = vadd.f32 %v610, %v613
    %vm615 = vweird.f32 %v566
    %vm616 = vweird.f32 %v610
    %vm617 = vmor %vm615, %vm616
    %v618 = vsel %vm617, %v610, %v614
    %v619 = vand.u32 2147483647, %v566
    %vm620 = vcmp.eq.f32.partialorder %v619, 8.507059e+37
    %v621 = vand.u32 %v566, 2147483648
    %v622 = vor.u32 1.1754944e-38, %v621
    %v623 = vsel %vm620, %v622, %v618
    %v624 = vrcp.pop %v569
    %v625 = vmul.f32 %v569, %v624
    %v626 = vsub.f32 1.0, %v625
    %v627 = vmul.f32 %v624, %v626
    %v628 = vadd.f32 %v624, %v627
    %vm629 = vweird.f32 %v569
    %vm630 = vweird.f32 %v624
    %vm631 = vmor %vm629, %vm630
    %v632 = vsel %vm631, %v624, %v628
    %v633 = vand.u32 2147483647, %v569
    %vm634 = vcmp.eq.f32.partialorder %v633, 8.507059e+37
    %v635 = vand.u32 %v569, 2147483648
    %v636 = vor.u32 1.1754944e-38, %v635
    %v637 = vsel %vm634, %v636, %v632
    %v638 = vrcp.pop %v572
    %v639 = vmul.f32 %v572, %v638
    %v640 = vsub.f32 1.0, %v639
    %v641 = vmul.f32 %v638, %v640
    %v642 = vadd.f32 %v638, %v641
    %vm643 = vweird.f32 %v572
    %vm644 = vweird.f32 %v638
    %vm645 = vmor %vm643, %vm644
    %v646 = vsel %vm645, %v638, %v642
    %v647 = vand.u32 2147483647, %v572
    %vm648 = vcmp.eq.f32.partialorder %v647, 8.507059e+37
    %v649 = vand.u32 %v572, 2147483648
    %v650 = vor.u32 1.1754944e-38, %v649
    %v651 = vsel %vm648, %v650, %v646
    %v652 = vrcp.pop %v575
    %v653 = vmul.f32 %v575, %v652
    %v654 = vsub.f32 1.0, %v653
    %v655 = vmul.f32 %v652, %v654
    %v656 = vadd.f32 %v652, %v655
    %vm657 = vweird.f32 %v575
    %vm658 = vweird.f32 %v652
    %vm659 = vmor %vm657, %vm658
    %v660 = vsel %vm659, %v652, %v656
    %v661 = vand.u32 2147483647, %v575
    %vm662 = vcmp.eq.f32.partialorder %v661, 8.507059e+37
    %v663 = vand.u32 %v575, 2147483648
    %v664 = vor.u32 1.1754944e-38, %v663
    %v665 = vsel %vm662, %v664, %v660
    %v666 = vrcp.pop %v578
    %v667 = vmul.f32 %v578, %v666
    %v668 = vsub.f32 1.0, %v667
    %v669 = vmul.f32 %v666, %v668
    %v670 = vadd.f32 %v666, %v669
    %vm671 = vweird.f32 %v578
    %vm672 = vweird.f32 %v666
    %vm673 = vmor %vm671, %vm672
    %v674 = vsel %vm673, %v666, %v670
    %v675 = vand.u32 2147483647, %v578
    %vm676 = vcmp.eq.f32.partialorder %v675, 8.507059e+37
    %v677 = vand.u32 %v578, 2147483648
    %v678 = vor.u32 1.1754944e-38, %v677
    %v679 = vsel %vm676, %v678, %v674
    %v680 = vrcp.pop %v581
    %v681 = vmul.f32 %v581, %v680
    %v682 = vsub.f32 1.0, %v681
    %v683 = vmul.f32 %v680, %v682
    %v684 = vadd.f32 %v680, %v683
    %vm685 = vweird.f32 %v581
    %vm686 = vweird.f32 %v680
    %vm687 = vmor %vm685, %vm686
    %v688 = vsel %vm687, %v680, %v684
    %v689 = vand.u32 2147483647, %v581
    %vm690 = vcmp.eq.f32.partialorder %v689, 8.507059e+37
    %v691 = vand.u32 %v581, 2147483648
    %v692 = vor.u32 1.1754944e-38, %v691
    %v693 = vsel %vm690, %v692, %v688
    %v694 = vmul.f32 %v543, %v595
    %v695 = vmul.f32 %v545, %v609
    %v696 = vmul.f32 %v547, %v623
    %v697 = vmul.f32 %v549, %v637
    %v698 = vmul.f32 %v551, %v651
    %v699 = vmul.f32 %v553, %v665
    %v700 = vmul.f32 %v555, %v679
    %v701 = vmul.f32 %v557, %v693
    %v703 = vsel %vm317, %v694, 0
    %705 = vmatpush.msra.mxu0 0.0
    %706 = vmatpush.msra.mxu0 0.0
    %707 = vmatpush.msra.mxu0 0.0
    %708 = vmatpush.msra.mxu0 0.0
    %709 = vmatpush.msra.mxu0 0.0
    %710 = vmatpush.msra.mxu0 0.0
    %711 = vmatpush.msra.mxu0 0.0
    %712 = vmatpush.msra.mxu0 0.0
    %713 = vmatpush.msra.mxu0 0.0
    %714 = vmatpush.msra.mxu0 0.0
    %715 = vmatpush.msra.mxu0 0.0
    %716 = vmatpush.msra.mxu0 0.0
    %717 = vmatpush.msra.mxu0 0.0
    %718 = vmatpush.msra.mxu0 0.0
    %719 = vmatpush.msra.mxu0 0.0
    %720 = vmatpush.msra.mxu0 %v264
    %721 = vmatmul.f32.gmra.mxu0 %v703
    %v722 = vpop.f32.mrf.mxu0
    %v723 = vadd.f32 0.0, %v722
    %724 = vdwg.mxu0
    %v726 = vsel %vm317, %v695, 0
    %728 = vmatpush.msra.mxu0 0.0
    %729 = vmatpush.msra.mxu0 0.0
    %730 = vmatpush.msra.mxu0 0.0
    %731 = vmatpush.msra.mxu0 0.0
    %732 = vmatpush.msra.mxu0 0.0
    %733 = vmatpush.msra.mxu0 0.0
    %734 = vmatpush.msra.mxu0 0.0
    %735 = vmatpush.msra.mxu0 0.0
    %736 = vmatpush.msra.mxu0 0.0
    %737 = vmatpush.msra.mxu0 0.0
    %738 = vmatpush.msra.mxu0 0.0
    %739 = vmatpush.msra.mxu0 0.0
    %740 = vmatpush.msra.mxu0 0.0
    %741 = vmatpush.msra.mxu0 0.0
    %742 = vmatpush.msra.mxu0 0.0
    %743 = vmatpush.msra.mxu0 %v267
    %744 = vmatmul.f32.gmra.mxu0 %v726
    %v745 = vpop.f32.mrf.mxu0
    %v746 = vadd.f32 0.0, %v745
    %747 = vdwg.mxu0
    %v749 = vsel %vm317, %v696, 0
    %751 = vmatpush.msra.mxu0 0.0
    %752 = vmatpush.msra.mxu0 0.0
    %753 = vmatpush.msra.mxu0 0.0
    %754 = vmatpush.msra.mxu0 0.0
    %755 = vmatpush.msra.mxu0 0.0
    %756 = vmatpush.msra.mxu0 0.0
    %757 = vmatpush.msra.mxu0 0.0
    %758 = vmatpush.msra.mxu0 0.0
    %759 = vmatpush.msra.mxu0 0.0
    %760 = vmatpush.msra.mxu0 0.0
    %761 = vmatpush.msra.mxu0 0.0
    %762 = vmatpush.msra.mxu0 0.0
    %763 = vmatpush.msra.mxu0 0.0
    %764 = vmatpush.msra.mxu0 0.0
    %765 = vmatpush.msra.mxu0 0.0
    %766 = vmatpush.msra.mxu0 %v300
    %767 = vmatmul.f32.gmra.mxu0 %v749
    %v768 = vpop.f32.mrf.mxu0
    %v769 = vadd.f32 0.0, %v768
    %770 = vdwg.mxu0
    %v772 = vsel %vm317, %v697, 0
    %774 = vmatpush.msra.mxu0 0.0
    %775 = vmatpush.msra.mxu0 0.0
    %776 = vmatpush.msra.mxu0 0.0
    %777 = vmatpush.msra.mxu0 0.0
    %778 = vmatpush.msra.mxu0 0.0
    %779 = vmatpush.msra.mxu0 0.0
    %780 = vmatpush.msra.mxu0 0.0
    %781 = vmatpush.msra.mxu0 0.0
    %782 = vmatpush.msra.mxu0 0.0
    %783 = vmatpush.msra.mxu0 0.0
    %784 = vmatpush.msra.mxu0 0.0
    %785 = vmatpush.msra.mxu0 0.0
    %786 = vmatpush.msra.mxu0 0.0
    %787 = vmatpush.msra.mxu0 0.0
    %788 = vmatpush.msra.mxu0 0.0
    %789 = vmatpush.msra.mxu0 %v302
    %790 = vmatmul.f32.gmra.mxu0 %v772
    %v791 = vpop.f32.mrf.mxu0
    %v792 = vadd.f32 0.0, %v791
    %793 = vdwg.mxu0
    %v795 = vsel %vm317, %v698, 0
    %797 = vmatpush.msra.mxu0 0.0
    %798 = vmatpush.msra.mxu0 0.0
    %799 = vmatpush.msra.mxu0 0.0
    %800 = vmatpush.msra.mxu0 0.0
    %801 = vmatpush.msra.mxu0 0.0
    %802 = vmatpush.msra.mxu0 0.0
    %803 = vmatpush.msra.mxu0 0.0
    %804 = vmatpush.msra.mxu0 0.0
    %805 = vmatpush.msra.mxu0 0.0
    %806 = vmatpush.msra.mxu0 0.0
    %807 = vmatpush.msra.mxu0 0.0
    %808 = vmatpush.msra.mxu0 0.0
    %809 = vmatpush.msra.mxu0 0.0
    %810 = vmatpush.msra.mxu0 0.0
    %811 = vmatpush.msra.mxu0 0.0
    %812 = vmatpush.msra.mxu0 %v306
    %813 = vmatmul.f32.gmra.mxu0 %v795
    %v814 = vpop.f32.mrf.mxu0
    %v815 = vadd.f32 0.0, %v814
    %816 = vdwg.mxu0
    %v818 = vsel %vm317, %v699, 0
    %820 = vmatpush.msra.mxu0 0.0
    %821 = vmatpush.msra.mxu0 0.0
    %822 = vmatpush.msra.mxu0 0.0
    %823 = vmatpush.msra.mxu0 0.0
    %824 = vmatpush.msra.mxu0 0.0
    %825 = vmatpush.msra.mxu0 0.0
    %826 = vmatpush.msra.mxu0 0.0
    %827 = vmatpush.msra.mxu0 0.0
    %828 = vmatpush.msra.mxu0 0.0
    %829 = vmatpush.msra.mxu0 0.0
    %830 = vmatpush.msra.mxu0 0.0
    %831 = vmatpush.msra.mxu0 0.0
    %832 = vmatpush.msra.mxu0 0.0
    %833 = vmatpush.msra.mxu0 0.0
    %834 = vmatpush.msra.mxu0 0.0
    %835 = vmatpush.msra.mxu0 %v308
    %836 = vmatmul.f32.gmra.mxu0 %v818
    %v837 = vpop.f32.mrf.mxu0
    %v838 = vadd.f32 0.0, %v837
    %839 = vdwg.mxu0
    %v841 = vsel %vm317, %v700, 0
    %843 = vmatpush.msra.mxu0 0.0
    %844 = vmatpush.msra.mxu0 0.0
    %845 = vmatpush.msra.mxu0 0.0
    %846 = vmatpush.msra.mxu0 0.0
    %847 = vmatpush.msra.mxu0 0.0
    %848 = vmatpush.msra.mxu0 0.0
    %849 = vmatpush.msra.mxu0 0.0
    %850 = vmatpush.msra.mxu0 0.0
    %851 = vmatpush.msra.mxu0 0.0
    %852 = vmatpush.msra.mxu0 0.0
    %853 = vmatpush.msra.mxu0 0.0
    %854 = vmatpush.msra.mxu0 0.0
    %855 = vmatpush.msra.mxu0 0.0
    %856 = vmatpush.msra.mxu0 0.0
    %857 = vmatpush.msra.mxu0 0.0
    %858 = vmatpush.msra.mxu0 %v312
    %859 = vmatmul.f32.gmra.mxu0 %v841
    %v860 = vpop.f32.mrf.mxu0
    %v861 = vadd.f32 0.0, %v860
    %862 = vdwg.mxu0
    %v864 = vsel %vm317, %v701, 0
    %866 = vmatpush.msra.mxu0 0.0
    %867 = vmatpush.msra.mxu0 0.0
    %868 = vmatpush.msra.mxu0 0.0
    %869 = vmatpush.msra.mxu0 0.0
    %870 = vmatpush.msra.mxu0 0.0
    %871 = vmatpush.msra.mxu0 0.0
    %872 = vmatpush.msra.mxu0 0.0
    %873 = vmatpush.msra.mxu0 0.0
    %874 = vmatpush.msra.mxu0 0.0
    %875 = vmatpush.msra.mxu0 0.0
    %876 = vmatpush.msra.mxu0 0.0
    %877 = vmatpush.msra.mxu0 0.0
    %878 = vmatpush.msra.mxu0 0.0
    %879 = vmatpush.msra.mxu0 0.0
    %880 = vmatpush.msra.mxu0 0.0
    %881 = vmatpush.msra.mxu0 %v314
    %882 = vmatmul.f32.gmra.mxu0 %v864
    %v883 = vpop.f32.mrf.mxu0
    %v884 = vadd.f32 0.0, %v883
    %885 = vdwg.mxu0
    %888 = vrot.lane.b32.xlu0 %v769, 8
    %v889 = vpop.permute.xlu0 %888
    %890 = vrot.lane.b32.xlu0 %v792, 8
    %v891 = vpop.permute.xlu0 %890
    %896 = vrot.lane.b32.xlu0 %v815, 16
    %v897 = vpop.permute.xlu0 %896
    %898 = vrot.lane.b32.xlu0 %v838, 16
    %v899 = vpop.permute.xlu0 %898
    %904 = vrot.lane.b32.xlu0 %v861, 24
    %v905 = vpop.permute.xlu0 %904
    %906 = vrot.lane.b32.xlu0 %v884, 24
    %v907 = vpop.permute.xlu0 %906
    %v910 = vsel %vm317, %v723, %v889
    %v911 = vsel %vm317, %v746, %v891
    %vm912 = vcmask 130048
    %v913 = vsel %vm912, %v910, %v897
    %v914 = vsel %vm912, %v911, %v899
    %vm915 = vcmask 195584
    %v916 = vsel %vm915, %v913, %v905
    %v917 = vsel %vm915, %v914, %v907
    %v918 = vld [vmem:[#allocation13] sm:$0xff]
    %v919 = vld [vmem:[#allocation13 + $0x8] sm:$0xff]
    %v920 = vld [vmem:[#allocation13 + $0x10] sm:$0xff]
    %v921 = vld [vmem:[#allocation13 + $0x18] sm:$0xff]
    %v922 = vld [vmem:[%s10] sm:$0x1]
    %v924 = vperm.slane %v922, 0
    %v927 = vsel %vm165, %v916, 0
    %v930 = vsel %vm165, %v917, 0
    %932 = vmatpush.msra.mxu0 0.0
    %933 = vmatpush.msra.mxu0 0.0
    %934 = vmatpush.msra.mxu0 0.0
    %935 = vmatpush.msra.mxu0 0.0
    %936 = vmatpush.msra.mxu0 0.0
    %937 = vmatpush.msra.mxu0 0.0
    %938 = vmatpush.msra.mxu0 0.0
    %939 = vmatpush.msra.mxu0 0.0
    %940 = vmatpush.msra.mxu0 0.0
    %941 = vmatpush.msra.mxu0 0.0
    %942 = vmatpush.msra.mxu0 0.0
    %943 = vmatpush.msra.mxu0 0.0
    %944 = vmatpush.msra.mxu0 %v921
    %945 = vmatpush.msra.mxu0 %v920
    %946 = vmatpush.msra.mxu0 %v919
    %947 = vmatpush.msra.mxu0 %v918
    %948 = vmatmul.f32.gmra.mxu0 %v927
    %v949 = vpop.f32.mrf.mxu0
    %v950 = vadd.f32 %v924, %v949
    %951 = vmatmul.f32.gmra.mxu0 %v930
    %v952 = vpop.f32.mrf.mxu0
    %v953 = vadd.f32 %v924, %v952
    %954 = vdwg.mxu0
    %955 = vst.msk [vmem:[#allocation14] sm:$0xff] %vm165, %v950
    %956 = vst.msk [vmem:[#allocation14 + $0x8] sm:$0xff] %vm165, %v953
    %v957 = vsel %vm317, %v694, 0.0
    %v958 = vsel %vm317, %v696, 0.0
    %v959 = vadd.f32 %v957, %v958
    %v960 = vsel %vm317, %v698, 0.0
    %v961 = vadd.f32 %v959, %v960
    %v962 = vsel %vm317, %v700, 0.0
    %v963 = vadd.f32 %v961, %v962
    %v964 = vsel %vm317, %v695, 0.0
    %v965 = vsel %vm317, %v697, 0.0
    %v966 = vadd.f32 %v964, %v965
    %v967 = vsel %vm317, %v699, 0.0
    %v968 = vadd.f32 %v966, %v967
    %v969 = vsel %vm317, %v701, 0.0
    %v970 = vadd.f32 %v968, %v969
    %v971 = vmul.f32 %v963, 0.25
    %v972 = vmul.f32 %v970, 0.25
    %973 = vst.msk [vmem:[#allocation15] sm:$0xff] %vm317, %v971
    %974 = vst.msk [vmem:[#allocation15 + $0x8] sm:$0xff] %vm317, %v972
    // Predicated region
    $region74: #{tpu_custom_call.1} parent=1 // pred_check
      _
    $region75: #{tpu_custom_call.1} parent=1 // pred_check_branch
      %976 = sbr.rel (0) target = $region77
    $region76: #{tpu_custom_call.1} parent=1 // pred_region
      %978 = vsyncadd [#allocation4], 0
      %s979 = sshll.u32 [#allocation14], 4
      %s980 = int_to_ptr.vmem [resolvable:$true] %s979
      %s981 = sshll.u32 %s11, 4
      %s982 = int_to_ptr.hbm [resolvable:$true] %s981
      %987 = dma.vmem_to_hbm [thread:$0]  %s980, 256, %s982, [#allocation4], 128, 128, 8
    $region77: #{tpu_custom_call.1} parent=1 // pred_fallthru
      _
    // Predicated region
    $region78: #{tpu_custom_call.1} parent=1 // pred_check
      _
    $region79: #{tpu_custom_call.1} parent=1 // pred_check_branch
      %989 = sbr.rel (0) target = $region81
    $region80: #{tpu_custom_call.1} parent=1 // pred_region
      %991 = vsyncadd [#allocation16], 0
      %s992 = sshll.u32 [#allocation15], 4
      %s993 = int_to_ptr.vmem [resolvable:$true] %s992
      %s994 = sshll.u32 %s12, 4
      %s995 = int_to_ptr.hbm [resolvable:$true] %s994
      %1000 = dma.vmem_to_hbm [thread:$0]  %s993, 256, %s995, [#allocation16], 128, 128, 8
    $region81: #{tpu_custom_call.1} parent=1 // pred_fallthru
      _
    // Predicated region
    $region82: #{tpu_custom_call.1} parent=1 // pred_check
      _
    $region83: #{tpu_custom_call.1} parent=1 // pred_check_branch
      %1002 = sbr.rel (0) target = $region85
    $region84: #{tpu_custom_call.1} parent=1 // pred_region
      %1004 = dma.done [#allocation4], 256
    $region85: #{tpu_custom_call.1} parent=1 // pred_fallthru
      _
    // Predicated region
    $region86: #{tpu_custom_call.1} parent=1 // pred_check
      _
    $region87: #{tpu_custom_call.1} parent=1 // pred_check_branch
      %1006 = sbr.rel (0) target = $region89
    $region88: #{tpu_custom_call.1} parent=1 // pred_region
      %1008 = dma.done [#allocation16], 256
    $region89: #{tpu_custom_call.1} parent=1 // pred_fallthru
      _
    %1009 = vsyncpa [#allocation3], 1
    %1010 = vsyncpa [#allocation6], 1
    %1011 = vsyncpa [#allocation9], 1
    %1012 = vsyncpa [#allocation12], 1
    %1013 = vsyncpa [#allocation4], 1
    %1014 = vsyncpa [#allocation16], 1

</llo_original>
